<compile_context>
chip_gen: v7x
topology: tpu7x:2x2x1
jax: 0.10.0
libtpu: 0.0.40
codegen_flags: <defaults>
</compile_context>

<pallas_src>
import functools
import math

import jax
import jax.numpy as jnp
from jax.experimental import pallas as pl
from jax.experimental.pallas import tpu as pltpu


# ---------------------------------------------------------------------------
# Path 1: block-diagonal packed matmul (all groups in one MXU op)
# ---------------------------------------------------------------------------
def _packed_kernel(x_ref, w_ref, *rest, use_bias):
    if use_bias:
        b_ref, o_ref = rest
    else:
        (o_ref,) = rest
    acc = jnp.dot(x_ref[...], w_ref[...], preferred_element_type=jnp.float32)
    if use_bias:
        acc = acc + b_ref[...].astype(jnp.float32)
    o_ref[...] = acc.astype(o_ref.dtype)


def _packed_forward(x, w, b, use_bias):
    B, G, din = x.shape
    dout = w.shape[-1]
    K, N = G * din, G * dout

    # (B, G, din) -> (B, G*din): contiguous reshape, no HBM transpose.
    x2 = x.reshape(B, K)

    # Block-diagonal packed weight (G*din, G*dout). Trades G x redundant FLOPs
    # (MXU is idle at these sizes anyway) for one well-shaped, lane-dense matmul.
    # TODO(synk): in a real module, precompute/cache w_packed once at init time.
    eye = jnp.eye(G, dtype=w.dtype)
    w_packed = (eye[:, None, :, None] * w[:, :, None, :]).reshape(K, N)

    # Tile the batch (M) dimension; for small B a single step handles everything.
    if B <= 512:
        tb, nb = B, 1
    else:
        tb = 256
        nb = pl.cdiv(B, tb)

    in_specs = [
        pl.BlockSpec((tb, K), lambda i: (i, 0)),
        pl.BlockSpec((K, N), lambda i: (0, 0)),      # weight resident across steps
    ]
    args = [x2, w_packed]
    bytes_accessed = x2.nbytes + w_packed.nbytes + B * N * x.dtype.itemsize
    if use_bias:
        b2 = b.reshape(1, N)
        in_specs.append(pl.BlockSpec((1, N), lambda i: (0, 0)))  # bias resident
        args.append(b2)
        bytes_accessed += b2.nbytes

    out2 = pl.pallas_call(
        functools.partial(_packed_kernel, use_bias=use_bias),
        out_shape=jax.ShapeDtypeStruct((B, N), x.dtype),
        grid_spec=pltpu.PrefetchScalarGridSpec(
            num_scalar_prefetch=0,
            grid=(nb,),
            in_specs=in_specs,
            out_specs=pl.BlockSpec((tb, N), lambda i: (i, 0)),
        ),
        compiler_params=pltpu.CompilerParams(
            dimension_semantics=("parallel",)),
        cost_estimate=pl.CostEstimate(
            flops=2 * B * G * din * dout,
            transcendentals=0,
            bytes_accessed=int(bytes_accessed)),
    )(*args)

    return out2.reshape(B, G, dout)


# ---------------------------------------------------------------------------
# Path 2: per-group, B/K-tiled kernel with lane-dense output (din,dout % 128 == 0)
# ---------------------------------------------------------------------------
def _grouped_kernel(x_ref, w_ref, *rest, use_bias):
    if use_bias:
        b_ref, o_ref, acc_ref = rest
    else:
        o_ref, acc_ref = rest
        b_ref = None

    k = pl.program_id(2)

    @pl.when(k == 0)
    def _():
        acc_ref[...] = jnp.zeros_like(acc_ref)

    acc_ref[...] += jnp.dot(x_ref[...], w_ref[0],
                            preferred_element_type=jnp.float32)

    @pl.when(k == pl.num_programs(2) - 1)
    def _():
        acc = acc_ref[...]
        if use_bias:
            acc = acc + b_ref[0].astype(jnp.float32)   # (1, dout) broadcasts over TB
        o_ref[...] = acc.astype(o_ref.dtype)


def _grouped_forward(x, w, b, use_bias):
    B, G, din = x.shape
    dout = w.shape[-1]

    # K tiling: 128-aligned tile dividing din (only tile when din is large).
    tk = din
    if din > 512:
        for cand in (512, 256, 128):
            if din % cand == 0:
                tk = cand
                break
    nk = din // tk
    kpg = din // tk  # K-blocks per group in the flattened (B, G*din) view

    # B tiling (M of the matmul). Note: on v7x (64 MiB VMEM) keep tb*dout and
    # tb*tk f32 working sets modest; these choices stay well under the default
    # scoped VMEM on all generations.
    if B <= 256:
        tb, nb = B, 1
    else:
        tb = 256
        nb = pl.cdiv(B, tb)

    x2 = x.reshape(B, G * din)       # contiguous reshape, no HBM transpose

    in_specs = [
        pl.BlockSpec((tb, tk), lambda g, bi, k: (bi, g * kpg + k)),
        pl.BlockSpec((1, tk, dout), lambda g, bi, k: (g, k, 0)),
    ]
    args = [x2, w]
    bytes_accessed = x2.nbytes + w.nbytes + B * G * dout * x.dtype.itemsize
    if use_bias:
        # Bias block index only depends on g (outermost grid axis): G DMAs total.
        in_specs.append(pl.BlockSpec((1, 1, dout), lambda g, bi, k: (0, g, 0)))
        args.append(b)
        bytes_accessed += b.nbytes

    out2 = pl.pallas_call(
        functools.partial(_grouped_kernel, use_bias=use_bias),
        out_shape=jax.ShapeDtypeStruct((B, G * dout), x.dtype),
        grid_spec=pltpu.PrefetchScalarGridSpec(
            num_scalar_prefetch=0,
            grid=(G, nb, nk),                          # reduction axis (K) last
            in_specs=in_specs,
            out_specs=pl.BlockSpec((tb, dout), lambda g, bi, k: (bi, g)),
            scratch_shapes=[pltpu.VMEM((tb, dout), jnp.float32)],
        ),
        compiler_params=pltpu.CompilerParams(
            dimension_semantics=("parallel", "parallel", "arbitrary")),
        cost_estimate=pl.CostEstimate(
            flops=2 * B * G * din * dout,
            transcendentals=0,
            bytes_accessed=int(bytes_accessed)),
    )(*args)

    return out2.reshape(B, G, dout)


# ---------------------------------------------------------------------------
# Path 3: general fallback (non-128-aligned shapes) -- transpose-based layout
# ---------------------------------------------------------------------------
def _legacy_kernel(x_ref, w_ref, *rest, use_bias):
    if use_bias:
        b_ref, o_ref = rest
    else:
        (o_ref,) = rest
    acc = jnp.dot(x_ref[0], w_ref[0], preferred_element_type=jnp.float32)
    if use_bias:
        acc = acc + b_ref[0].astype(jnp.float32)
    o_ref[0] = acc.astype(o_ref.dtype)


def _legacy_forward(x, w, b, use_bias):
    # TODO(synk): non-aligned large shapes keep the (G,B,*) layout for guaranteed
    # lowering; this costs one transpose of x and of out outside the kernel.
    B, G, din = x.shape
    dout = w.shape[-1]
    x_t = jnp.transpose(x, (1, 0, 2))  # (G, B, din)

    in_specs = [
        pl.BlockSpec((1, B, din), lambda g: (g, 0, 0)),
        pl.BlockSpec((1, din, dout), lambda g: (g, 0, 0)),
    ]
    args = [x_t, w]
    if use_bias:
        in_specs.append(pl.BlockSpec((1, 1, dout), lambda g: (0, g, 0)))
        args.append(b)

    out_t = pl.pallas_call(
        functools.partial(_legacy_kernel, use_bias=use_bias),
        out_shape=jax.ShapeDtypeStruct((G, B, dout), x.dtype),
        grid_spec=pltpu.PrefetchScalarGridSpec(
            num_scalar_prefetch=0,
            grid=(G,),
            in_specs=in_specs,
            out_specs=pl.BlockSpec((1, B, dout), lambda g: (g, 0, 0)),
        ),
        compiler_params=pltpu.CompilerParams(
            dimension_semantics=("parallel",)),
    )(*args)
    return jnp.transpose(out_t, (1, 0, 2))


# ---------------------------------------------------------------------------
# Dispatcher (forward pass of GroupLinearLayer)
# ---------------------------------------------------------------------------
def group_linear_layer(x, w, b=None, use_bias=True):
    """x: (B, G, din), w: (G, din, dout), b: (1, G, dout) -> (B, G, dout)."""
    B, G, din = x.shape
    dout = w.shape[-1]
    if use_bias and b is None:
        raise ValueError("use_bias=True requires a bias array")

    K, N = G * din, G * dout
    itemsize = x.dtype.itemsize
    if K * N * itemsize <= 4 * 1024 * 1024:
        # Small-group regime: one fused block-diagonal matmul.
        return _packed_forward(x, w, b, use_bias)
    if din % 128 == 0 and dout % 128 == 0:
        # Large, MXU/lane-aligned shapes: tiled per-group kernel.
        return _grouped_forward(x, w, b, use_bias)
    return _legacy_forward(x, w, b, use_bias)


if __name__ == "__main__":
    # Shapes consistent with the module: batch=2, num_blocks=4, din=32, dout=16.
    B, G, DIN, DOUT = 2, 4, 32, 16
    key = jax.random.PRNGKey(0)
    kx, kw, kb = jax.random.split(key, 3)
    bound = math.sqrt(1.0 / DIN)
    x = jax.random.normal(kx, (B, G, DIN), dtype=jnp.float32)
    w = jax.random.uniform(kw, (G, DIN, DOUT), dtype=jnp.float32,
                           minval=-bound, maxval=bound)
    b = jax.random.uniform(kb, (1, G, DOUT), dtype=jnp.float32,
                           minval=-bound, maxval=bound)

    # Packed path, with bias.
    out = jax.block_until_ready(group_linear_layer(x, w, b, use_bias=True))
    ref = jnp.einsum("bgi,gio->bgo", x, w) + b
    assert out.shape == (B, G, DOUT)
    assert jnp.allclose(out, ref, atol=1e-4, rtol=1e-4)

    # Bias-free variant (compiles a kernel without the bias operand).
    out_nb = jax.block_until_ready(group_linear_layer(x, w, None, use_bias=False))
    assert jnp.allclose(out_nb, jnp.einsum("bgi,gio->bgo", x, w),
                        atol=1e-4, rtol=1e-4)

    # Grouped, K-tiled path (128-aligned din/dout, larger shapes).
    B2, G2, DIN2, DOUT2 = 16, 4, 1024, 256
    kx2, kw2, kb2 = jax.random.split(jax.random.PRNGKey(1), 3)
    bound2 = math.sqrt(1.0 / DIN2)
    x_l = jax.random.normal(kx2, (B2, G2, DIN2), dtype=jnp.float32)
    w_l = jax.random.uniform(kw2, (G2, DIN2, DOUT2), dtype=jnp.float32,
                             minval=-bound2, maxval=bound2)
    b_l = jax.random.uniform(kb2, (1, G2, DOUT2), dtype=jnp.float32,
                             minval=-bound2, maxval=bound2)
    out_l = jax.block_until_ready(group_linear_layer(x_l, w_l, b_l, use_bias=True))
    ref_l = jnp.einsum("bgi,gio->bgo", x_l, w_l,
                       precision=jax.lax.Precision.HIGHEST) + b_l
    assert out_l.shape == (B2, G2, DOUT2)
    assert jnp.allclose(out_l, ref_l, atol=2e-2, rtol=2e-2)

    # Legacy fallback path (large, non-128-aligned shapes).
    B3, G3, DIN3, DOUT3 = 8, 4, 1056, 96
    kx3, kw3, kb3 = jax.random.split(jax.random.PRNGKey(2), 3)
    bound3 = math.sqrt(1.0 / DIN3)
    x_m = jax.random.normal(kx3, (B3, G3, DIN3), dtype=jnp.float32)
    w_m = jax.random.uniform(kw3, (G3, DIN3, DOUT3), dtype=jnp.float32,
                             minval=-bound3, maxval=bound3)
    b_m = jax.random.uniform(kb3, (1, G3, DOUT3), dtype=jnp.float32,
                             minval=-bound3, maxval=bound3)
    out_m = jax.block_until_ready(group_linear_layer(x_m, w_m, b_m, use_bias=True))
    ref_m = jnp.einsum("bgi,gio->bgo", x_m, w_m,
                       precision=jax.lax.Precision.HIGHEST) + b_m
    assert out_m.shape == (B3, G3, DOUT3)
    assert jnp.allclose(out_m, ref_m, atol=2e-2, rtol=2e-2)

    print("KERNEL_OK")
</pallas_src>

<mosaic_0001>
module attributes {stable_mosaic.version = 11 : i64} {
  func.func @_packed_kernel(%arg0: i32, %arg1: memref<2x128xf32, #tpu.memory_space<vmem>>, %arg2: memref<128x64xf32, #tpu.memory_space<vmem>>, %arg3: memref<1x64xf32, #tpu.memory_space<vmem>>, %arg4: memref<2x64xf32, #tpu.memory_space<vmem>>) attributes {dimension_semantics = [#tpu.dimension_semantics<parallel>], iteration_bounds = array<i64: 1>, scalar_prefetch = 0 : i64, scratch_operands = 0 : i64, tpu.core_type = #tpu.core_type<tc>, window_params = [{transform_indices = @transform_0, window_bounds = array<i64: 2, 128>}, {pipeline_mode = #tpu.pipeline_mode<synchronous>, transform_indices = @transform_1, window_bounds = array<i64: 128, 64>}, {pipeline_mode = #tpu.pipeline_mode<synchronous>, transform_indices = @transform_2, window_bounds = array<i64: 1, 64>}, {transform_indices = @transform_3, window_bounds = array<i64: 2, 64>}]} {
    %c0 = arith.constant 0 : index
    %c0_0 = arith.constant 0 : index
    %0 = vector.load %arg1[%c0, %c0_0] : memref<2x128xf32, #tpu.memory_space<vmem>>, vector<2x128xf32>
    %c0_1 = arith.constant 0 : index
    %c0_2 = arith.constant 0 : index
    %1 = vector.load %arg2[%c0_1, %c0_2] : memref<128x64xf32, #tpu.memory_space<vmem>>, vector<128x64xf32>
    %cst = arith.constant dense<0.000000e+00> : vector<2x64xf32>
    %2 = tpu.matmul %0, %1, %cst {dimension_numbers = #tpu.dot_dimension_numbers<[1], [0], [0], [1], [0, 0, 1, 1], [], []>} : vector<2x128xf32>, vector<128x64xf32>, vector<2x64xf32> -> vector<2x64xf32>
    %c0_3 = arith.constant 0 : index
    %c0_4 = arith.constant 0 : index
    %3 = vector.load %arg3[%c0_3, %c0_4] : memref<1x64xf32, #tpu.memory_space<vmem>>, vector<1x64xf32>
    %4 = vector.broadcast %3 : vector<1x64xf32> to vector<2x64xf32>
    %5 = arith.addf %2, %4 : vector<2x64xf32>
    %c0_5 = arith.constant 0 : index
    %c0_6 = arith.constant 0 : index
    %6 = vector.load %arg4[%c0_5, %c0_6] : memref<2x64xf32, #tpu.memory_space<vmem>>, vector<2x64xf32>
    tpu.vector_store %arg4[%c0_5, %c0_6], %5 {strides = array<i32>} : memref<2x64xf32, #tpu.memory_space<vmem>>, vector<2x64xf32>,
    return
  }
  func.func @transform_0(%arg0: i32) -> (i32, i32) {
    %c0_i32 = arith.constant 0 : i32
    %c0_i32_0 = arith.constant 0 : i32
    return %arg0, %c0_i32 : i32, i32
  }
  func.func @transform_1(%arg0: i32) -> (i32, i32) {
    %c0_i32 = arith.constant 0 : i32
    %c0_i32_0 = arith.constant 0 : i32
    %c0_i32_1 = arith.constant 0 : i32
    return %c0_i32, %c0_i32_0 : i32, i32
  }
  func.func @transform_2(%arg0: i32) -> (i32, i32) {
    %c0_i32 = arith.constant 0 : i32
    %c0_i32_0 = arith.constant 0 : i32
    %c0_i32_1 = arith.constant 0 : i32
    return %c0_i32, %c0_i32_0 : i32, i32
  }
  func.func @transform_3(%arg0: i32) -> (i32, i32) {
    %c0_i32 = arith.constant 0 : i32
    %c0_i32_0 = arith.constant 0 : i32
    return %arg0, %c0_i32 : i32, i32
  }
}

</mosaic_0001>

<llo_original>
// kernel: tpu_custom_call.1
$region0: #{tpu_custom_call.1}
  #allocation0 [shape = 'u32[]', space=smem, size = 0x4, offset = 0x4, fixed_abs, tag = 'smem constant byte address 0x4 - core index']
  #allocation1 [shape = 'u32[144,128]{1,0:T(1,128)}', space=vmem, size = 0x12000, scoped, tag = 'internal scratch']
  %s0 = inlined_call_operand.vmem [shape: f32[2,128], index: 0, kind: input, shape index: {}]
  %s1 = inlined_call_operand.vmem [shape: f32[128,64], index: 1, kind: input, shape index: {}]
  %s2 = inlined_call_operand.vmem [shape: f32[1,64], index: 2, kind: input, shape index: {}]
  %s3 = inlined_call_operand.hbm [shape: f32[2,64], index: 3, kind: output, shape index: {}]
  %s4 = sld [smem:[#allocation0]]
  $region22: #{tpu_custom_call.1} parent=0
    _
  %s6 = ssub.s32 1, %s4
  %s7 = scalar_select 0, %s6, %s4
  $region1: #{tpu_custom_call.1} parent=0
    #allocation2 [shape = 'u8[1024]{0}', space=vmem, size = 0x400, scoped, tag = 'output window, operand 0, single buffered']
    #allocation3 [shape = 's32[1]{0}', space=sflag, size = 0x4, scoped, tag = 'scoped memory for tpu_custom_call.1']
    %8 = vsyncpa [#allocation3], 0
    // Predicated region
    $region2: #{tpu_custom_call.1} parent=1 // pred_check
      _
    $region3: #{tpu_custom_call.1} parent=1 // pred_check_branch
      %10 = sbr.rel (0) target = $region5
    $region4: #{tpu_custom_call.1} parent=1 // pred_region
      _
    $region5: #{tpu_custom_call.1} parent=1 // pred_fallthru
      _
    // Predicated region
    $region6: #{tpu_custom_call.1} parent=1 // pred_check
      _
    $region7: #{tpu_custom_call.1} parent=1 // pred_check_branch
      %12 = sbr.rel (0) target = $region9
    $region8: #{tpu_custom_call.1} parent=1 // pred_region
      _
    $region9: #{tpu_custom_call.1} parent=1 // pred_fallthru
      _
    // Predicated region
    $region10: #{tpu_custom_call.1} parent=1 // pred_check
      _
    $region11: #{tpu_custom_call.1} parent=1 // pred_check_branch
      %14 = sbr.rel (0) target = $region13
    $region12: #{tpu_custom_call.1} parent=1 // pred_region
      _
    $region13: #{tpu_custom_call.1} parent=1 // pred_fallthru
      _
    %v15 = vld [vmem:[%s0] sm:$0x3]
    %v16 = vld [vmem:[%s1] sm:$0xff]
    %v17 = vld [vmem:[%s1 + $0x8] sm:$0xff]
    %v18 = vld [vmem:[%s1 + $0x10] sm:$0xff]
    %v19 = vld [vmem:[%s1 + $0x18] sm:$0xff]
    %v20 = vld [vmem:[%s1 + $0x20] sm:$0xff]
    %v21 = vld [vmem:[%s1 + $0x28] sm:$0xff]
    %v22 = vld [vmem:[%s1 + $0x30] sm:$0xff]
    %v23 = vld [vmem:[%s1 + $0x38] sm:$0xff]
    %v24 = vld [vmem:[%s1 + $0x40] sm:$0xff]
    %v25 = vld [vmem:[%s1 + $0x48] sm:$0xff]
    %v26 = vld [vmem:[%s1 + $0x50] sm:$0xff]
    %v27 = vld [vmem:[%s1 + $0x58] sm:$0xff]
    %v28 = vld [vmem:[%s1 + $0x60] sm:$0xff]
    %v29 = vld [vmem:[%s1 + $0x68] sm:$0xff]
    %v30 = vld [vmem:[%s1 + $0x70] sm:$0xff]
    %v31 = vld [vmem:[%s1 + $0x78] sm:$0xff]
    %v32 = vld [vmem:[%s2] sm:$0x1]
    %v34 = vlaneseq
    %v35 = vshrl.u32 %v34, 7
    %v36 = vsub.s32 0, %v35
    %v37 = vrot.slane %v32, %v36
    %39 = vmatprep.subr.mxu0 0.0
    %40 = vmatpush1.msra.mxu0 %v16
    %41 = vmatprep.subr.mxu0 0.0
    %42 = vmatpush1.msra.mxu0 %v17
    %43 = vmatprep.subr.mxu0 0.0
    %44 = vmatpush1.msra.mxu0 %v18
    %45 = vmatprep.subr.mxu0 0.0
    %46 = vmatpush1.msra.mxu0 %v19
    %47 = vmatprep.subr.mxu0 0.0
    %48 = vmatpush1.msra.mxu0 %v20
    %49 = vmatprep.subr.mxu0 0.0
    %50 = vmatpush1.msra.mxu0 %v21
    %51 = vmatprep.subr.mxu0 0.0
    %52 = vmatpush1.msra.mxu0 %v22
    %53 = vmatprep.subr.mxu0 0.0
    %54 = vmatpush1.msra.mxu0 %v23
    %55 = vmatprep.subr.mxu0 0.0
    %56 = vmatpush1.msra.mxu0 %v24
    %57 = vmatprep.subr.mxu0 0.0
    %58 = vmatpush1.msra.mxu0 %v25
    %59 = vmatprep.subr.mxu0 0.0
    %60 = vmatpush1.msra.mxu0 %v26
    %61 = vmatprep.subr.mxu0 0.0
    %62 = vmatpush1.msra.mxu0 %v27
    %63 = vmatprep.subr.mxu0 0.0
    %64 = vmatpush1.msra.mxu0 %v28
    %65 = vmatprep.subr.mxu0 0.0
    %66 = vmatpush1.msra.mxu0 %v29
    %67 = vmatprep.subr.mxu0 0.0
    %68 = vmatpush1.msra.mxu0 %v30
    %69 = vmatprep.subr.mxu0 0.0
    %70 = vmatpush1.msra.mxu0 %v31
    %71 = vmatprep.subr.mxu0 0.0
    %72 = vmatpush1.msra.mxu0 0.0
    %73 = vmatprep.subr.mxu0 0.0
    %74 = vmatpush1.msra.mxu0 0.0
    %75 = vmatprep.subr.mxu0 0.0
    %76 = vmatpush1.msra.mxu0 0.0
    %77 = vmatprep.subr.mxu0 0.0
    %78 = vmatpush1.msra.mxu0 0.0
    %79 = vmatprep.subr.mxu0 0.0
    %80 = vmatpush1.msra.mxu0 0.0
    %81 = vmatprep.subr.mxu0 0.0
    %82 = vmatpush1.msra.mxu0 0.0
    %83 = vmatprep.subr.mxu0 0.0
    %84 = vmatpush1.msra.mxu0 0.0
    %85 = vmatprep.subr.mxu0 0.0
    %86 = vmatpush1.msra.mxu0 0.0
    %87 = vmatprep.subr.mxu0 0.0
    %88 = vmatpush1.msra.mxu0 0.0
    %89 = vmatprep.subr.mxu0 0.0
    %90 = vmatpush1.msra.mxu0 0.0
    %91 = vmatprep.subr.mxu0 0.0
    %92 = vmatpush1.msra.mxu0 0.0
    %93 = vmatprep.subr.mxu0 0.0
    %94 = vmatpush1.msra.mxu0 0.0
    %95 = vmatprep.subr.mxu0 0.0
    %96 = vmatpush1.msra.mxu0 0.0
    %97 = vmatprep.subr.mxu0 0.0
    %98 = vmatpush1.msra.mxu0 0.0
    %99 = vmatprep.subr.mxu0 0.0
    %100 = vmatpush1.msra.mxu0 0.0
    %101 = vmatprep.subr.mxu0 0.0
    %102 = vmatpush1.msra.mxu0 0.0
    %103 = vmatprep.mubr.f32.mxu0 0.0
    %104 = vmatmul.mubr.f32.gmra.mrb[0].mxu0 %v15
    %v105 = vpop.f32.mrb[0].mxu0
    %v106 = vadd.f32 %v37, %v105
    %v107 = vpop.f32.mrb[0].mxu0
    %108 = vdwg.mxu0
    %vm109 = vcmask 517120
    %110 = vst.msk [vmem:[#allocation2] sm:$0x3] %vm109, %v106
    // Predicated region
    $region14: #{tpu_custom_call.1} parent=1 // pred_check
      _
    $region15: #{tpu_custom_call.1} parent=1 // pred_check_branch
      %112 = sbr.rel (0) target = $region17
    $region16: #{tpu_custom_call.1} parent=1 // pred_region
      %s114 = ssub.s32 32, 32
      %115 = vsyncadd [#allocation3], %s114
      %s117 = sshll.u32 [#allocation2], 4
      %s118 = int_to_ptr.vmem [resolvable:$true] %s117
      %120 = dma.vmem_to_hbm [thread:$0]  %s118, 32, %s3, [#allocation3]
    $region17: #{tpu_custom_call.1} parent=1 // pred_fallthru
      _
    // Predicated region
    $region18: #{tpu_custom_call.1} parent=1 // pred_check
      _
    $region19: #{tpu_custom_call.1} parent=1 // pred_check_branch
      %122 = sbr.rel (0) target = $region21
    $region20: #{tpu_custom_call.1} parent=1 // pred_region
      %123 = dma.done [#allocation3], 32
    $region21: #{tpu_custom_call.1} parent=1 // pred_fallthru
      _
    %124 = vsyncpa [#allocation3], 1

</llo_original>
